<compile_context>
chip_gen: v5e
topology: v5e:2x2
jax: 0.10.0
libtpu: 0.0.40
codegen_flags: <defaults>
</compile_context>

<pallas_src>
import functools

import jax
import jax.numpy as jnp
from jax.experimental import pallas as pl
from jax.experimental.pallas import tpu as pltpu


def _round_up(x, m):
    return ((x + m - 1) // m) * m


def _net2_layer_kernel(x_ref, w_ref, b_ref, o_ref, acc_ref, *, compute_dtype):
    """One grid step == one Linear layer applied to the resident activation.

    x_ref:   (Bp, Dp)      input activations (block index constant -> DMA'd once)
    w_ref:   (1, Dp, Dp)   this layer's weight panel (streamed, double-buffered)
    b_ref:   (1, 1, Dp)    this layer's bias row
    o_ref:   (Bp, Dp)      output (resident across the layer axis)
    acc_ref: (Bp, Dp) f32  running activation, persists across grid steps
    """
    l = pl.program_id(0)

    @pl.when(l == 0)
    def _():
        acc_ref[...] = x_ref[...].astype(jnp.float32)

    x = acc_ref[...]
    w = w_ref[0]                      # (Dp, Dp)
    b = b_ref[0]                      # (1, Dp) -> broadcasts over batch
    y = jnp.dot(
        x.astype(compute_dtype),
        w.astype(compute_dtype),
        preferred_element_type=jnp.float32,
    ) + b.astype(jnp.float32)
    acc_ref[...] = y

    @pl.when(l == pl.num_programs(0) - 1)
    def _():
        o_ref[...] = y.astype(o_ref.dtype)


def net2_forward(x, w_stack, b_stack, *, compute_dtype=jnp.float32):
    """Net2 forward pass.

    x:       (B, D) f32
    w_stack: (L, D, D), stored pre-transposed so y = x @ W + b
             (equivalent to PyTorch's x @ W_pt.T + b)
    b_stack: (L, D)
    """
    L, D, D2 = w_stack.shape
    assert D == D2, "Net2 forward requires in_dim == out_dim"
    B = x.shape[0]

    # Lane/sublane alignment: last dim -> multiple of 128, batch -> multiple of 8.
    Dp = _round_up(D, 128)
    Bp = _round_up(B, 8)
    xp = jnp.zeros((Bp, Dp), x.dtype).at[:B, :D].set(x)
    wp = jnp.zeros((L, Dp, Dp), w_stack.dtype).at[:, :D, :D].set(w_stack)
    bp = jnp.zeros((L, 1, Dp), b_stack.dtype).at[:, 0, :D].set(b_stack)
    # Zero padding keeps the padded feature lanes exactly zero through every
    # layer, so slicing the result back is exact.

    kernel = functools.partial(_net2_layer_kernel, compute_dtype=compute_dtype)

    flops = 2 * L * Bp * Dp * Dp
    bytes_accessed = int(
        wp.size * wp.dtype.itemsize
        + bp.size * bp.dtype.itemsize
        + 2 * Bp * Dp * x.dtype.itemsize
    )

    out_p = pl.pallas_call(
        kernel,
        out_shape=jax.ShapeDtypeStruct((Bp, Dp), x.dtype),
        grid_spec=pltpu.PrefetchScalarGridSpec(
            num_scalar_prefetch=0,
            grid=(L,),
            in_specs=[
                pl.BlockSpec((Bp, Dp), lambda l: (0, 0)),        # x: loaded once
                pl.BlockSpec((1, Dp, Dp), lambda l: (l, 0, 0)),  # W_l: streamed
                pl.BlockSpec((1, 1, Dp), lambda l: (l, 0, 0)),   # b_l: streamed
            ],
            out_specs=pl.BlockSpec((Bp, Dp), lambda l: (0, 0)),  # resident output
            scratch_shapes=[pltpu.VMEM((Bp, Dp), jnp.float32)],  # running activation
        ),
        compiler_params=pltpu.CompilerParams(
            dimension_semantics=("arbitrary",),  # layer axis is a true dependency chain
        ),
        cost_estimate=pl.CostEstimate(
            flops=flops, transcendentals=0, bytes_accessed=bytes_accessed
        ),
    )(xp, wp, bp)

    return out_p[:B, :D]


def init_net2_params(key, in_dim, depth, out_dim):
    """Deterministic init mimicking nn.Linear's U(-1/sqrt(fan_in), 1/sqrt(fan_in))."""
    assert in_dim == out_dim, "Net2 forward requires in_dim == out_dim"
    num_layers = 2 * depth
    bound = 1.0 / (in_dim ** 0.5)
    kw, kb = jax.random.split(key)
    # stored already transposed: (L, in_dim, out_dim) so y = x @ W + b
    w_stack = jax.random.uniform(
        kw, (num_layers, in_dim, out_dim), jnp.float32, -bound, bound
    )
    b_stack = jax.random.uniform(
        kb, (num_layers, out_dim), jnp.float32, -bound, bound
    )
    return w_stack, b_stack


def net2_reference(x, w_stack, b_stack):
    for i in range(w_stack.shape[0]):
        x = x @ w_stack[i] + b_stack[i]
    return x


if __name__ == "__main__":
    # NOTE: at this toy size (8x32, 6 layers) per-call overhead dominates; the
    # kernel structure is what matters for real sizes.
    batch, hidden, depth = 8, 32, 3          # in_dim == out_dim == hidden
    key = jax.random.PRNGKey(0)
    kx, kp = jax.random.split(key)
    x = jax.random.normal(kx, (batch, hidden), jnp.float32)
    w_stack, b_stack = init_net2_params(kp, hidden, depth, hidden)

    out = net2_forward(x, w_stack, b_stack)   # compute_dtype=jnp.bfloat16 for v6e/v7x
    out = jax.block_until_ready(out)

    ref = net2_reference(x, w_stack, b_stack)
    assert out.shape == (batch, hidden)
    assert jnp.allclose(out, ref, atol=1e-4, rtol=1e-4)

    print("KERNEL_OK")
</pallas_src>

<mosaic_0001>
module attributes {stable_mosaic.version = 11 : i64} {
  func.func @_net2_layer_kernel(%arg0: i32, %arg1: memref<8x128xf32, #tpu.memory_space<vmem>>, %arg2: memref<1x128x128xf32, #tpu.memory_space<vmem>>, %arg3: memref<1x1x128xf32, #tpu.memory_space<vmem>>, %arg4: memref<8x128xf32, #tpu.memory_space<vmem>>, %arg5: memref<8x128xf32, #tpu.memory_space<vmem>>) attributes {dimension_semantics = [#tpu.dimension_semantics<arbitrary>], iteration_bounds = array<i64: 6>, scalar_prefetch = 0 : i64, scratch_operands = 1 : i64, tpu.core_type = #tpu.core_type<tc>, window_params = [{pipeline_mode = #tpu.pipeline_mode<synchronous>, transform_indices = @transform_0, window_bounds = array<i64: 8, 128>}, {transform_indices = @transform_1, window_bounds = array<i64: 1, 128, 128>}, {transform_indices = @transform_2, window_bounds = array<i64: 1, 1, 128>}, {pipeline_mode = #tpu.pipeline_mode<synchronous>, transform_indices = @transform_3, window_bounds = array<i64: 8, 128>}]} {
    %c0_i32 = arith.constant 0 : i32
    %0 = arith.cmpi eq, %arg0, %c0_i32 : i32
    %1 = arith.extui %0 : i1 to i32
    %c0_i32_0 = arith.constant 0 : i32
    %2 = arith.cmpi ne, %1, %c0_i32_0 : i32
    scf.if %2 {
      %c0_11 = arith.constant 0 : index
      %c0_12 = arith.constant 0 : index
      %15 = vector.load %arg1[%c0_11, %c0_12] : memref<8x128xf32, #tpu.memory_space<vmem>>, vector<8x128xf32>
      %c0_13 = arith.constant 0 : index
      %c0_14 = arith.constant 0 : index
      %16 = vector.load %arg5[%c0_13, %c0_14] : memref<8x128xf32, #tpu.memory_space<vmem>>, vector<8x128xf32>
      tpu.vector_store %arg5[%c0_13, %c0_14], %15 {strides = array<i32>} : memref<8x128xf32, #tpu.memory_space<vmem>>, vector<8x128xf32>,
    } else {
    }
    %c0 = arith.constant 0 : index
    %c0_1 = arith.constant 0 : index
    %3 = vector.load %arg5[%c0, %c0_1] : memref<8x128xf32, #tpu.memory_space<vmem>>, vector<8x128xf32>
    %c0_2 = arith.constant 0 : index
    %c0_3 = arith.constant 0 : index
    %c0_4 = arith.constant 0 : index
    %4 = vector.load %arg2[%c0_2, %c0_3, %c0_4] : memref<1x128x128xf32, #tpu.memory_space<vmem>>, vector<1x128x128xf32>
    %5 = vector.shape_cast %4 : vector<1x128x128xf32> to vector<128x128xf32>
    %c0_5 = arith.constant 0 : index
    %c0_6 = arith.constant 0 : index
    %c0_7 = arith.constant 0 : index
    %6 = vector.load %arg3[%c0_5, %c0_6, %c0_7] : memref<1x1x128xf32, #tpu.memory_space<vmem>>, vector<1x1x128xf32>
    %7 = vector.shape_cast %6 : vector<1x1x128xf32> to vector<1x128xf32>
    %cst = arith.constant dense<0.000000e+00> : vector<8x128xf32>
    %8 = tpu.matmul %3, %5, %cst {dimension_numbers = #tpu.dot_dimension_numbers<[1], [0], [0], [1], [0, 0, 1, 1], [], []>} : vector<8x128xf32>, vector<128x128xf32>, vector<8x128xf32> -> vector<8x128xf32>
    %9 = vector.broadcast %7 : vector<1x128xf32> to vector<8x128xf32>
    %10 = arith.addf %8, %9 : vector<8x128xf32>
    %c0_8 = arith.constant 0 : index
    %c0_9 = arith.constant 0 : index
    %11 = vector.load %arg5[%c0_8, %c0_9] : memref<8x128xf32, #tpu.memory_space<vmem>>, vector<8x128xf32>
    tpu.vector_store %arg5[%c0_8, %c0_9], %10 {strides = array<i32>} : memref<8x128xf32, #tpu.memory_space<vmem>>, vector<8x128xf32>,
    %c5_i32 = arith.constant 5 : i32
    %12 = arith.cmpi eq, %arg0, %c5_i32 : i32
    %13 = arith.extui %12 : i1 to i32
    %c0_i32_10 = arith.constant 0 : i32
    %14 = arith.cmpi ne, %13, %c0_i32_10 : i32
    scf.if %14 {
      %c0_11 = arith.constant 0 : index
      %c0_12 = arith.constant 0 : index
      %15 = vector.load %arg4[%c0_11, %c0_12] : memref<8x128xf32, #tpu.memory_space<vmem>>, vector<8x128xf32>
      tpu.vector_store %arg4[%c0_11, %c0_12], %10 {strides = array<i32>} : memref<8x128xf32, #tpu.memory_space<vmem>>, vector<8x128xf32>,
    } else {
    }
    return
  }
  func.func @transform_0(%arg0: i32) -> (i32, i32) {
    %c0_i32 = arith.constant 0 : i32
    %c0_i32_0 = arith.constant 0 : i32
    %c0_i32_1 = arith.constant 0 : i32
    return %c0_i32, %c0_i32_0 : i32, i32
  }
  func.func @transform_1(%arg0: i32) -> (i32, i32, i32) {
    %c0_i32 = arith.constant 0 : i32
    %c0_i32_0 = arith.constant 0 : i32
    %c0_i32_1 = arith.constant 0 : i32
    return %arg0, %c0_i32, %c0_i32_0 : i32, i32, i32
  }
  func.func @transform_2(%arg0: i32) -> (i32, i32, i32) {
    %c0_i32 = arith.constant 0 : i32
    %c0_i32_0 = arith.constant 0 : i32
    %c0_i32_1 = arith.constant 0 : i32
    return %arg0, %c0_i32, %c0_i32_0 : i32, i32, i32
  }
  func.func @transform_3(%arg0: i32) -> (i32, i32) {
    %c0_i32 = arith.constant 0 : i32
    %c0_i32_0 = arith.constant 0 : i32
    %c0_i32_1 = arith.constant 0 : i32
    return %c0_i32, %c0_i32_0 : i32, i32
  }
}

</mosaic_0001>

<llo_original>
// kernel: tpu_custom_call.1
$region0: #{tpu_custom_call.1}
  #allocation0 [shape = 'u32[]', space=smem, size = 0x4, offset = 0x4, fixed_abs, tag = 'smem constant byte address 0x4 - core index']
  #allocation1 [shape = 'u32[72,128]{1,0:T(1,128)}', space=vmem, size = 0x9000, scoped, tag = 'internal scratch']
  #allocation2 [shape = 'f32[8,128]{1,0:T(8,128)}', space=vmem, size = 0x1000, scoped, tag = 'scratch operand']
  %s0 = inlined_call_operand.hbm [shape: f32[8,128], index: 0, kind: input, shape index: {}]
  %s1 = inlined_call_operand.hbm [shape: f32[6,128,128], index: 1, kind: input, shape index: {}]
  %s2 = inlined_call_operand.hbm [shape: f32[6,1,128], index: 2, kind: input, shape index: {}]
  %s3 = inlined_call_operand.hbm [shape: f32[8,128], index: 3, kind: output, shape index: {}]
  %s4 = sld [smem:[#allocation0]]
  $region65: #{tpu_custom_call.1} parent=0
    _
  %s6 = ssub.s32 1, %s4
  %s7 = scalar_select 0, %s6, %s4
  $region1: #{tpu_custom_call.1} parent=0
    #allocation3 [shape = 'u8[4096]{0}', space=vmem, size = 0x1000, scoped, tag = 'input window, operand 0, single buffered']
    #allocation4 [shape = 's32[2]{0}', space=sflag, size = 0x8, scoped, tag = 'scoped memory for tpu_custom_call.1']
    #allocation5 [shape = 's32[2]{0}', space=sflag, size = 0x8, scoped, tag = 'scoped memory for tpu_custom_call.1']
    #allocation6 [shape = 'u8[131072]{0}', space=vmem, size = 0x20000, scoped, tag = 'input window, operand 1']
    #allocation7 [shape = 's32[2]{0}', space=sflag, size = 0x8, scoped, tag = 'scoped memory for tpu_custom_call.1']
    #allocation8 [shape = 'u8[1024]{0}', space=vmem, size = 0x400, scoped, tag = 'input window, operand 2']
    #allocation9 [shape = 'u8[4096]{0}', space=vmem, size = 0x1000, scoped, tag = 'output window, operand 0, single buffered']
    %8 = vsyncpa [#allocation4], 0
    %9 = vsyncpa [#allocation7], 0
    %s10 = scalar_lea.sflag [#allocation7], 1
    %11 = vsyncpa %s10, 0
    %12 = vsyncpa [#allocation5], 0
    loop: start=0, step=1, limit=8
    $region2: #{tpu_custom_call.1} parent=1 // loop_pre_header
      _
    $region3: #{tpu_custom_call.1} parent=1 // loop_header
      %s14 = sphi 0, %s18
      %p15 = scmp.ge.s32.totalorder %s14, 8
      %s22 = sphi 0, %s22
      %s24 = sphi 0, %s22
      %s25 = sphi 0, %s24
      %s39 = sphi 0, %s25
      %s45 = sphi 0, %s47
      %s48 = sphi 0, %s45
      %s49 = sphi 0, %s48
      %s65 = sphi 0, %s49
      %s71 = sphi 0, %s73
      %s74 = sphi 0, %s71
      %s75 = sphi 0, %s74
      %s91 = sphi 0, %s75
      %s95 = sphi 0, %s95
      %s97 = sphi 0, %s95
      %s98 = sphi 0, %s97
      %s112 = sphi 0, %s98
    $region4: #{tpu_custom_call.1} parent=1 // loop_header_branch
      %17 = sbr.rel (%p15) target = $region8
    $region5: #{tpu_custom_call.1} parent=1 // loop_body
      %s19 = ssub.s32 %s14, 1
      %s20 = ssub.s32 %s14, 2
      %s21 = sadd.s32 %s14, 1
      %s23 = sadd.s32 %s22, 1
      %p26 = scmp.eq.s32.totalorder %s14, 5
      %p27 = scmp.ne.s32.totalorder %s22, %s24
      %p28 = scmp.eq.s32.totalorder %s14, 0
      %p29 = por %p27, %p28
      %p30 = scmp.ne.s32.totalorder %s22, %s24
      %p31 = scmp.eq.s32.totalorder %s19, 5
      %p32 = por %p30, %p31
      %p33 = scmp.ne.s32.totalorder %s24, %s25
      %p34 = scmp.eq.s32.totalorder %s19, 0
      %p35 = por %p33, %p34
      %p36 = scmp.ne.s32.totalorder %s24, %s25
      %p37 = scmp.eq.s32.totalorder %s20, 5
      %p38 = por %p36, %p37
      %p40 = scmp.ne.s32.totalorder %s25, %s39
      %p41 = scmp.eq.s32.totalorder %s20, 0
      %p42 = por %p40, %p41
      %s43 = ssub.s32 %s14, %s21
      %p44 = scmp.eq.s32.totalorder %s43, 0
      %s46 = sadd.s32 %s45, 1
      %s47 = scalar_select %p44, %s45, %s46
      %p50 = pneg %p44
      %p51 = scmp.eq.s32.totalorder %s14, 5
      %p52 = por %p50, %p51
      %p53 = scmp.ne.s32.totalorder %s45, %s48
      %p54 = scmp.eq.s32.totalorder %s14, 0
      %p55 = por %p53, %p54
      %p56 = scmp.ne.s32.totalorder %s45, %s48
      %p57 = scmp.eq.s32.totalorder %s19, 5
      %p58 = por %p56, %p57
      %p59 = scmp.ne.s32.totalorder %s48, %s49
      %p60 = scmp.eq.s32.totalorder %s19, 0
      %p61 = por %p59, %p60
      %p62 = scmp.ne.s32.totalorder %s48, %s49
      %p63 = scmp.eq.s32.totalorder %s20, 5
      %p64 = por %p62, %p63
      %p66 = scmp.ne.s32.totalorder %s49, %s65
      %p67 = scmp.eq.s32.totalorder %s20, 0
      %p68 = por %p66, %p67
      %s69 = ssub.s32 %s14, %s21
      %p70 = scmp.eq.s32.totalorder %s69, 0
      %s72 = sadd.s32 %s71, 1
      %s73 = scalar_select %p70, %s71, %s72
      %p76 = pneg %p70
      %p77 = scmp.eq.s32.totalorder %s14, 5
      %p78 = por %p76, %p77
      %p79 = scmp.ne.s32.totalorder %s71, %s74
      %p80 = scmp.eq.s32.totalorder %s14, 0
      %p81 = por %p79, %p80
      %p82 = scmp.ne.s32.totalorder %s71, %s74
      %p83 = scmp.eq.s32.totalorder %s19, 5
      %p84 = por %p82, %p83
      %p85 = scmp.ne.s32.totalorder %s74, %s75
      %p86 = scmp.eq.s32.totalorder %s19, 0
      %p87 = por %p85, %p86
      %p88 = scmp.ne.s32.totalorder %s74, %s75
      %p89 = scmp.eq.s32.totalorder %s20, 5
      %p90 = por %p88, %p89
      %p92 = scmp.ne.s32.totalorder %s75, %s91
      %p93 = scmp.eq.s32.totalorder %s20, 0
      %p94 = por %p92, %p93
      %s96 = sadd.s32 %s95, 1
      %p99 = scmp.eq.s32.totalorder %s14, 5
      %p100 = scmp.ne.s32.totalorder %s95, %s97
      %p101 = scmp.eq.s32.totalorder %s14, 0
      %p102 = por %p100, %p101
      %p103 = scmp.ne.s32.totalorder %s95, %s97
      %p104 = scmp.eq.s32.totalorder %s19, 5
      %p105 = por %p103, %p104
      %p106 = scmp.ne.s32.totalorder %s97, %s98
      %p107 = scmp.eq.s32.totalorder %s19, 0
      %p108 = por %p106, %p107
      %p109 = scmp.ne.s32.totalorder %s97, %s98
      %p110 = scmp.eq.s32.totalorder %s20, 5
      %p111 = por %p109, %p110
      %p113 = scmp.ne.s32.totalorder %s98, %s112
      %p114 = scmp.eq.s32.totalorder %s20, 0
      %p115 = por %p113, %p114
      %p116 = scmp.le.s32.totalorder 1, %s14
      %p117 = scmp.lt.s32.totalorder %s14, 7
      %p118 = pnand %p116, %p117
      %p119 = pneg %p118
      // Predicated region
      $region9: #{tpu_custom_call.1} parent=5 // pred_check
        _
      $region10: #{tpu_custom_call.1} parent=5 // pred_check_branch
        %121 = sbr.rel (%p118) target = $region12
      $region11: #{tpu_custom_call.1} parent=5 // pred_region
        %s122 = ssub.s32 %s14, 1
        // Predicated region
        $region13: #{tpu_custom_call.1} parent=11 // pred_check
          %p123 = pneg %p35
        $region14: #{tpu_custom_call.1} parent=11 // pred_check_branch
          %125 = sbr.rel (%p123) target = $region16
        $region15: #{tpu_custom_call.1} parent=11 // pred_region
          %127 = vsyncadd [#allocation4], 0
          %s129 = sshll.u32 %s0, 4
          %s130 = int_to_ptr.hbm [resolvable:$true] %s129
          %s131 = sshll.u32 [#allocation3], 4
          %s132 = int_to_ptr.vmem [resolvable:$true] %s131
          %134 = dma.hbm_to_vmem [thread:$0]  %s130, 128, %s132, [#allocation4]
        $region16: #{tpu_custom_call.1} parent=11 // pred_fallthru
          _
      $region12: #{tpu_custom_call.1} parent=5 // pred_fallthru
        _
      %p135 = scmp.lt.s32.totalorder %s14, 6
      // Predicated region
      $region17: #{tpu_custom_call.1} parent=5 // pred_check
        %p136 = pneg %p135
      $region18: #{tpu_custom_call.1} parent=5 // pred_check_branch
        %138 = sbr.rel (%p136) target = $region20
      $region19: #{tpu_custom_call.1} parent=5 // pred_region
        // Predicated region
        $region21: #{tpu_custom_call.1} parent=19 // pred_check
          %p139 = pneg %p55
        $region22: #{tpu_custom_call.1} parent=19 // pred_check_branch
          %141 = sbr.rel (%p139) target = $region24
        $region23: #{tpu_custom_call.1} parent=19 // pred_region
          %s142 = sand.u32 %s14, 1
          %s143 = scalar_lea.sflag [#allocation7], %s142
          %s144 = sand.u32 %s45, 1
          %s145 = smul.addr %s144, 128
          %s146 = scalar_lea.vmem [#allocation6], %s145
          %148 = vsyncadd %s143, 0
          %s149 = smul.addr %s14, 16
          %s150 = smul.addr %s149, 8
          %s151 = scalar_lea.hbm %s1, %s150
          %s152 = sshll.u32 %s151, 4
          %s153 = int_to_ptr.hbm [resolvable:$true] %s152
          %s154 = sshll.u32 %s146, 4
          %s155 = int_to_ptr.vmem [resolvable:$true] %s154
          %160 = dma.hbm_to_vmem [thread:$0]  %s153, 2048, %s155, %s143, 128, 128, 8
        $region24: #{tpu_custom_call.1} parent=19 // pred_fallthru
          _
        // Predicated region
        $region25: #{tpu_custom_call.1} parent=19 // pred_check
          %p161 = pneg %p81
        $region26: #{tpu_custom_call.1} parent=19 // pred_check_branch
          %163 = sbr.rel (%p161) target = $region28
        $region27: #{tpu_custom_call.1} parent=19 // pred_region
          %s164 = sand.u32 %s14, 1
          %s165 = scalar_lea.sflag [#allocation7], %s164
          %s166 = sand.u32 %s71, 1
          %s167 = scalar_lea.vmem [#allocation8], %s166
          %169 = vsyncadd %s165, 0
          %s170 = scalar_lea.hbm %s2, %s14
          %s172 = sshll.u32 %s170, 4
          %s173 = int_to_ptr.hbm [resolvable:$true] %s172
          %s174 = sshll.u32 %s167, 4
          %s175 = int_to_ptr.vmem [resolvable:$true] %s174
          %177 = dma.hbm_to_vmem [thread:$0]  %s173, 16, %s175, %s165
        $region28: #{tpu_custom_call.1} parent=19 // pred_fallthru
          _
      $region20: #{tpu_custom_call.1} parent=5 // pred_fallthru
        _
      %p178 = scmp.le.s32.totalorder 1, %s14
      %p179 = scmp.lt.s32.totalorder %s14, 7
      %p180 = pnand %p178, %p179
      %p181 = pneg %p180
      // Predicated region
      $region29: #{tpu_custom_call.1} parent=5 // pred_check
        _
      $region30: #{tpu_custom_call.1} parent=5 // pred_check_branch
        %183 = sbr.rel (%p180) target = $region32
      $region31: #{tpu_custom_call.1} parent=5 // pred_region
        %s184 = ssub.s32 %s14, 1
        // Predicated region
        $region33: #{tpu_custom_call.1} parent=31 // pred_check
          %p185 = pneg %p35
        $region34: #{tpu_custom_call.1} parent=31 // pred_check_branch
          %187 = sbr.rel (%p185) target = $region36
        $region35: #{tpu_custom_call.1} parent=31 // pred_region
          %189 = dma.done [#allocation4], 128
        $region36: #{tpu_custom_call.1} parent=31 // pred_fallthru
          _
        %s190 = sand.u32 %s19, 1
        %s191 = scalar_lea.sflag [#allocation7], %s190
        %s192 = sand.u32 %s48, 1
        %s193 = smul.addr %s192, 128
        %s194 = scalar_lea.vmem [#allocation6], %s193
        // Predicated region
        $region37: #{tpu_custom_call.1} parent=31 // pred_check
          %p195 = pneg %p61
        $region38: #{tpu_custom_call.1} parent=31 // pred_check_branch
          %197 = sbr.rel (%p195) target = $region40
        $region39: #{tpu_custom_call.1} parent=31 // pred_region
          %199 = dma.done %s191, 2048
        $region40: #{tpu_custom_call.1} parent=31 // pred_fallthru
          _
        %s200 = sand.u32 %s19, 1
        %s201 = scalar_lea.sflag [#allocation7], %s200
        %s202 = sand.u32 %s74, 1
        %s203 = scalar_lea.vmem [#allocation8], %s202
        // Predicated region
        $region41: #{tpu_custom_call.1} parent=31 // pred_check
          %p204 = pneg %p87
        $region42: #{tpu_custom_call.1} parent=31 // pred_check_branch
          %206 = sbr.rel (%p204) target = $region44
        $region43: #{tpu_custom_call.1} parent=31 // pred_region
          %208 = dma.done %s201, 16
        $region44: #{tpu_custom_call.1} parent=31 // pred_fallthru
          _
        %p209 = pneg %p35
        %p210 = pneg %p32
        %s211 = sand.u32 %s19, 1
        %s212 = scalar_lea.sflag [#allocation7], %s211
        %s213 = sand.u32 %s48, 1
        %s214 = smul.addr %s213, 128
        %s215 = scalar_lea.vmem [#allocation6], %s214
        %p216 = pneg %p61
        %p217 = pneg %p58
        %s218 = sand.u32 %s19, 1
        %s219 = scalar_lea.sflag [#allocation7], %s218
        %s220 = sand.u32 %s74, 1
        %s221 = scalar_lea.vmem [#allocation8], %s220
        %p222 = pneg %p87
        %p223 = pneg %p84
        %p224 = pneg %p108
        %p225 = pneg %p105
        %p226 = scmp.eq.s32.totalorder %s19, 0
        // Predicated region
        $region45: #{tpu_custom_call.1} parent=31 // pred_check
          %p227 = pneg %p226
        $region46: #{tpu_custom_call.1} parent=31 // pred_check_branch
          %229 = sbr.rel (%p227) target = $region48
        $region47: #{tpu_custom_call.1} parent=31 // pred_region
          %v230 = vld [vmem:[#allocation3] sm:$0xff]
          %231 = vst [vmem:[#allocation2] sm:$0xff] %v230
        $region48: #{tpu_custom_call.1} parent=31 // pred_fallthru
          _
        %v232 = vld [vmem:[#allocation2] sm:$0xff]
        %v233 = vld [vmem:[%s194] sm:$0xff]
        %v234 = vld [vmem:[%s194 + $0x8] sm:$0xff]
        %v235 = vld [vmem:[%s194 + $0x10] sm:$0xff]
        %v236 = vld [vmem:[%s194 + $0x18] sm:$0xff]
        %v237 = vld [vmem:[%s194 + $0x20] sm:$0xff]
        %v238 = vld [vmem:[%s194 + $0x28] sm:$0xff]
        %v239 = vld [vmem:[%s194 + $0x30] sm:$0xff]
        %v240 = vld [vmem:[%s194 + $0x38] sm:$0xff]
        %v241 = vld [vmem:[%s194 + $0x40] sm:$0xff]
        %v242 = vld [vmem:[%s194 + $0x48] sm:$0xff]
        %v243 = vld [vmem:[%s194 + $0x50] sm:$0xff]
        %v244 = vld [vmem:[%s194 + $0x58] sm:$0xff]
        %v245 = vld [vmem:[%s194 + $0x60] sm:$0xff]
        %v246 = vld [vmem:[%s194 + $0x68] sm:$0xff]
        %v247 = vld [vmem:[%s194 + $0x70] sm:$0xff]
        %v248 = vld [vmem:[%s194 + $0x78] sm:$0xff]
        %v249 = vld [vmem:[%s203] sm:$0x1]
        %v251 = vperm.slane %v249, 0
        %253 = vmatpush.msra.mxu0 %v248
        %254 = vmatpush.msra.mxu0 %v247
        %255 = vmatpush.msra.mxu0 %v246
        %256 = vmatpush.msra.mxu0 %v245
        %257 = vmatpush.msra.mxu0 %v244
        %258 = vmatpush.msra.mxu0 %v243
        %259 = vmatpush.msra.mxu0 %v242
        %260 = vmatpush.msra.mxu0 %v241
        %261 = vmatpush.msra.mxu0 %v240
        %262 = vmatpush.msra.mxu0 %v239
        %263 = vmatpush.msra.mxu0 %v238
        %264 = vmatpush.msra.mxu0 %v237
        %265 = vmatpush.msra.mxu0 %v236
        %266 = vmatpush.msra.mxu0 %v235
        %267 = vmatpush.msra.mxu0 %v234
        %268 = vmatpush.msra.mxu0 %v233
        %269 = vmatmul.f32.gmra.mxu0 %v232
        %v270 = vpop.f32.mrf.mxu0
        %v271 = vadd.f32 %v251, %v270
        %272 = vdwg.mxu0
        %273 = vst [vmem:[#allocation2] sm:$0xff] %v271
        %p274 = scmp.eq.s32.totalorder %s19, 5
        // Predicated region
        $region49: #{tpu_custom_call.1} parent=31 // pred_check
          %p275 = pneg %p274
        $region50: #{tpu_custom_call.1} parent=31 // pred_check_branch
          %277 = sbr.rel (%p275) target = $region52
        $region51: #{tpu_custom_call.1} parent=31 // pred_region
          %278 = vst [vmem:[#allocation9] sm:$0xff] %v271
        $region52: #{tpu_custom_call.1} parent=31 // pred_fallthru
          _
        // Predicated region
        $region53: #{tpu_custom_call.1} parent=31 // pred_check
          %p279 = pneg %p105
        $region54: #{tpu_custom_call.1} parent=31 // pred_check_branch
          %281 = sbr.rel (%p279) target = $region56
        $region55: #{tpu_custom_call.1} parent=31 // pred_region
          %283 = vsyncadd [#allocation5], 0
          %s285 = sshll.u32 [#allocation9], 4
          %s286 = int_to_ptr.vmem [resolvable:$true] %s285
          %s287 = sshll.u32 %s3, 4
          %s288 = int_to_ptr.hbm [resolvable:$true] %s287
          %290 = dma.vmem_to_hbm [thread:$0]  %s286, 128, %s288, [#allocation5]
        $region56: #{tpu_custom_call.1} parent=31 // pred_fallthru
          _
        // Predicated region
        $region57: #{tpu_custom_call.1} parent=31 // pred_check
          %p291 = pneg %p105
        $region58: #{tpu_custom_call.1} parent=31 // pred_check_branch
          %293 = sbr.rel (%p291) target = $region60
        $region59: #{tpu_custom_call.1} parent=31 // pred_region
          %295 = dma.done [#allocation5], 128
        $region60: #{tpu_custom_call.1} parent=31 // pred_fallthru
          _
      $region32: #{tpu_custom_call.1} parent=5 // pred_fallthru
        _
      %p296 = scmp.le.s32.totalorder 2, %s14
      // Predicated region
      $region61: #{tpu_custom_call.1} parent=5 // pred_check
        %p297 = pneg %p296
      $region62: #{tpu_custom_call.1} parent=5 // pred_check_branch
        %299 = sbr.rel (%p297) target = $region64
      $region63: #{tpu_custom_call.1} parent=5 // pred_region
        %s300 = ssub.s32 %s14, 2
      $region64: #{tpu_custom_call.1} parent=5 // pred_fallthru
        _
    $region6: #{tpu_custom_call.1} parent=1 // loop_footer
      %s18 = sadd.s32 1, %s14
    $region7: #{tpu_custom_call.1} parent=1 // loop_footer_branch
      %13 = sbr.rel target = $region3
    $region8: #{tpu_custom_call.1} parent=1 // loop_exit
      _
    %301 = vsyncpa [#allocation4], 1
    %s302 = scalar_lea.sflag [#allocation4], 1
    %303 = vsyncpa %s302, 1
    %304 = vsyncpa [#allocation7], 1
    %s305 = scalar_lea.sflag [#allocation7], 1
    %306 = vsyncpa %s305, 1
    %307 = vsyncpa [#allocation5], 1
    %s308 = scalar_lea.sflag [#allocation5], 1
    %309 = vsyncpa %s308, 1

</llo_original>
